<compile_context>
chip_gen: v7x
topology: tpu7x:2x2x1
jax: 0.10.0
libtpu: 0.0.40
codegen_flags: <defaults>
</compile_context>

<pallas_src>
import jax
import jax.numpy as jnp
from jax.experimental import pallas as pl
from jax.experimental.pallas import tpu as pltpu


def _preprocessor_kernel(x_ref, o_ref):
    # x_ref: (tm, D) tile in VMEM; reduce over the feature dim (lane axis).
    x = x_ref[...].astype(jnp.float32)
    mean = jnp.mean(x, axis=1, keepdims=True)
    centered = x - mean
    # 1/||centered|| via rsqrt (EUP) * centered (VPU) instead of sqrt+divide.
    # NOTE: matches PyTorch semantics exactly -> a constant row gives 0/0
    # (NaN), same as the reference.  No eps added on purpose.
    inv_norm = jax.lax.rsqrt(jnp.sum(centered * centered, axis=1, keepdims=True))
    o_ref[...] = (centered * inv_norm).astype(o_ref.dtype)


def _sublane_multiple(dtype) -> int:
    # f32 -> 8, bf16 -> 16, int8/fp8 -> 32 (packed-dtype sublane multiples).
    return max(8, 32 // jnp.dtype(dtype).itemsize)


def _choose_tm(N, D, in_dtype, out_dtype, vmem_dma_budget_bytes=16 * 1024 * 1024):
    """Largest row tile whose double-buffered in+out DMA windows fit a
    conservative VMEM budget (safe on v7x's smaller VMEM)."""
    in_b = jnp.dtype(in_dtype).itemsize
    out_b = jnp.dtype(out_dtype).itemsize
    mult = max(_sublane_multiple(in_dtype), _sublane_multiple(out_dtype))
    # 2 input buffers + 2 output buffers per grid step (+ f32 compute temps
    # covered by the headroom left under vmem_limit_bytes).
    bytes_per_row = D * (2 * in_b + 2 * out_b)
    tm = vmem_dma_budget_bytes // max(bytes_per_row, 1)
    tm = max(mult, min(int(tm), 4096))
    tm = (tm // mult) * mult
    # No point tiling larger than N rounded up to the sublane multiple.
    n_ceil = ((N + mult - 1) // mult) * mult
    tm = min(tm, n_ceil)
    return max(tm, mult)


def _preprocess_2d(x, tm=None):
    N, D = x.shape
    out_dtype = x.dtype
    if tm is None:
        tm = _choose_tm(N, D, x.dtype, out_dtype)

    # Partial last block (when tm does not divide N) is handled by Pallas:
    # out-of-bounds stores are masked, and rows are independent so the
    # garbage tail never affects valid rows.  No HBM pad/slice copies.
    grid = (pl.cdiv(N, tm),)
    return pl.pallas_call(
        _preprocessor_kernel,
        out_shape=jax.ShapeDtypeStruct((N, D), out_dtype),
        grid_spec=pltpu.PrefetchScalarGridSpec(
            num_scalar_prefetch=0,
            grid=grid,
            in_specs=[pl.BlockSpec((tm, D), lambda i: (i, 0))],
            out_specs=pl.BlockSpec((tm, D), lambda i: (i, 0)),
        ),
        compiler_params=pltpu.CompilerParams(
            # Row grid is embarrassingly parallel -> megacore sharding on v7x;
            # no-op (and free) on v5e/v6e.
            dimension_semantics=("parallel",),
            # Explicit, generation-safe scoped-VMEM limit (<= v7x physical).
            vmem_limit_bytes=32 * 1024 * 1024,
        ),
    )(x)


def preprocessor(x, *, tm=None):
    """Center and L2-normalize over dim=1 (PyTorch `Preprocessor.forward`).

    2D [N, D] inputs (the CKN use case) run the kernel directly with D on the
    lane axis.  Higher-rank inputs are supported by folding the non-reduced
    dims into rows (moveaxis + reshape outside the kernel).
    """
    if x.ndim == 2:
        return _preprocess_2d(x, tm)
    # General rank: reduce over dim=1.  Move it last, flatten, kernel, undo.
    # TODO(synk): the moveaxis costs an extra HBM pass for ndim > 2; a
    # sublane-reduction kernel would avoid it but is not needed for CKN.
    perm_back_shape = x.shape
    xt = jnp.moveaxis(x, 1, -1)
    flat = xt.reshape(-1, x.shape[1])
    out = _preprocess_2d(flat, tm)
    out = out.reshape(xt.shape)
    return jnp.moveaxis(out, -1, 1).reshape(perm_back_shape)


def preprocessor_ref(x):
    # Pure-JAX reference mirroring the PyTorch forward.
    xf = x.astype(jnp.float32)
    out = xf - jnp.mean(xf, axis=1, keepdims=True)
    norm = jnp.sqrt(jnp.sum(out * out, axis=1, keepdims=True))
    return (out / norm).astype(x.dtype)


if __name__ == "__main__":
    key = jax.random.PRNGKey(0)

    # Small shape consistent with the module: [N samples, D features].
    N, D = 16, 128
    x = jax.random.normal(key, (N, D), dtype=jnp.float32)
    y = preprocessor(x)
    jax.block_until_ready(y)
    y_ref = preprocessor_ref(x)
    assert jnp.allclose(y, y_ref, atol=1e-5, rtol=1e-5), "mismatch vs reference"

    # Ragged-N / non-multiple-of-128 D case (exercises partial-block masking).
    x2 = jax.random.normal(jax.random.PRNGKey(1), (13, 96), dtype=jnp.float32)
    y2 = preprocessor(x2)
    jax.block_until_ready(y2)
    y2_ref = preprocessor_ref(x2)
    assert jnp.allclose(y2, y2_ref, atol=1e-5, rtol=1e-5), "ragged mismatch"

    # bf16 path (f32 internal accumulation).
    x3 = jax.random.normal(jax.random.PRNGKey(2), (32, 256), dtype=jnp.bfloat16)
    y3 = preprocessor(x3)
    jax.block_until_ready(y3)
    y3_ref = preprocessor_ref(x3)
    assert jnp.allclose(
        y3.astype(jnp.float32), y3_ref.astype(jnp.float32), atol=1e-2, rtol=1e-2
    ), "bf16 mismatch"

    print("KERNEL_OK")
</pallas_src>

<mosaic_0001>
module attributes {stable_mosaic.version = 11 : i64} {
  func.func @_preprocessor_kernel(%arg0: i32, %arg1: memref<16x128xf32, #tpu.memory_space<vmem>>, %arg2: memref<16x128xf32, #tpu.memory_space<vmem>>) attributes {dimension_semantics = [#tpu.dimension_semantics<parallel>], iteration_bounds = array<i64: 1>, scalar_prefetch = 0 : i64, scratch_operands = 0 : i64, tpu.core_type = #tpu.core_type<tc>, window_params = [{transform_indices = @transform_0, window_bounds = array<i64: 16, 128>}, {transform_indices = @transform_1, window_bounds = array<i64: 16, 128>}]} {
    %c0 = arith.constant 0 : index
    %c0_0 = arith.constant 0 : index
    %0 = vector.load %arg1[%c0, %c0_0] : memref<16x128xf32, #tpu.memory_space<vmem>>, vector<16x128xf32>
    %cst = arith.constant dense<0.000000e+00> : vector<16xf32>
    %1 = vector.multi_reduction <add>, %0, %cst [1] : vector<16x128xf32> to vector<16xf32>
    %2 = vector.shape_cast %1 : vector<16xf32> to vector<16x1xf32>
    %cst_1 = arith.constant 1.280000e+02 : f32
    %3 = vector.broadcast %cst_1 : f32 to vector<16x1xf32>
    %4 = arith.divf %2, %3 : vector<16x1xf32>
    %5 = vector.broadcast %4 : vector<16x1xf32> to vector<16x128xf32>
    %6 = arith.subf %0, %5 : vector<16x128xf32>
    %7 = arith.mulf %6, %6 : vector<16x128xf32>
    %cst_2 = arith.constant dense<0.000000e+00> : vector<16xf32>
    %8 = vector.multi_reduction <add>, %7, %cst_2 [1] : vector<16x128xf32> to vector<16xf32>
    %9 = vector.shape_cast %8 : vector<16xf32> to vector<16x1xf32>
    %10 = math.rsqrt %9 : vector<16x1xf32>
    %11 = vector.broadcast %10 : vector<16x1xf32> to vector<16x128xf32>
    %12 = arith.mulf %6, %11 : vector<16x128xf32>
    %c0_3 = arith.constant 0 : index
    %c0_4 = arith.constant 0 : index
    %13 = vector.load %arg2[%c0_3, %c0_4] : memref<16x128xf32, #tpu.memory_space<vmem>>, vector<16x128xf32>
    tpu.vector_store %arg2[%c0_3, %c0_4], %12 {strides = array<i32>} : memref<16x128xf32, #tpu.memory_space<vmem>>, vector<16x128xf32>,
    return
  }
  func.func @transform_0(%arg0: i32) -> (i32, i32) {
    %c0_i32 = arith.constant 0 : i32
    %c0_i32_0 = arith.constant 0 : i32
    return %arg0, %c0_i32 : i32, i32
  }
  func.func @transform_1(%arg0: i32) -> (i32, i32) {
    %c0_i32 = arith.constant 0 : i32
    %c0_i32_0 = arith.constant 0 : i32
    return %arg0, %c0_i32 : i32, i32
  }
}

</mosaic_0001>

<llo_original>
// kernel: tpu_custom_call.1
$region0: #{tpu_custom_call.1}
  #allocation0 [shape = 'u32[]', space=smem, size = 0x4, offset = 0x4, fixed_abs, tag = 'smem constant byte address 0x4 - core index']
  #allocation1 [shape = 'u32[144,128]{1,0:T(1,128)}', space=vmem, size = 0x12000, scoped, tag = 'internal scratch']
  %s0 = inlined_call_operand.hbm [shape: f32[16,128], index: 0, kind: input, shape index: {}]
  %s1 = inlined_call_operand.hbm [shape: f32[16,128], index: 1, kind: output, shape index: {}]
  %s2 = sld [smem:[#allocation0]]
  $region18: #{tpu_custom_call.1} parent=0
    _
  %s4 = ssub.s32 1, %s2
  %s5 = scalar_select 0, %s4, %s2
  $region1: #{tpu_custom_call.1} parent=0
    #allocation2 [shape = 'u8[8192]{0}', space=vmem, size = 0x2000, scoped, tag = 'input window, operand 0, single buffered']
    #allocation3 [shape = 's32[1]{0}', space=sflag, size = 0x4, scoped, tag = 'scoped memory for tpu_custom_call.1']
    #allocation4 [shape = 's32[1]{0}', space=sflag, size = 0x4, scoped, tag = 'scoped memory for tpu_custom_call.1']
    #allocation5 [shape = 'u8[8192]{0}', space=vmem, size = 0x2000, scoped, tag = 'output window, operand 0, single buffered']
    %6 = vsyncpa [#allocation3], 0
    %7 = vsyncpa [#allocation4], 0
    // Predicated region
    $region2: #{tpu_custom_call.1} parent=1 // pred_check
      _
    $region3: #{tpu_custom_call.1} parent=1 // pred_check_branch
      %9 = sbr.rel (0) target = $region5
    $region4: #{tpu_custom_call.1} parent=1 // pred_region
      %s11 = ssub.s32 256, 256
      %12 = vsyncadd [#allocation3], %s11
      %s13 = sshll.u32 [#allocation2], 4
      %s14 = int_to_ptr.vmem [resolvable:$true] %s13
      %19 = dma.hbm_to_vmem [thread:$0]  %s0, 256, %s14, [#allocation3], 128, 128, 8
    $region5: #{tpu_custom_call.1} parent=1 // pred_fallthru
      _
    // Predicated region
    $region6: #{tpu_custom_call.1} parent=1 // pred_check
      _
    $region7: #{tpu_custom_call.1} parent=1 // pred_check_branch
      %21 = sbr.rel (0) target = $region9
    $region8: #{tpu_custom_call.1} parent=1 // pred_region
      %22 = dma.done [#allocation3], 256
    $region9: #{tpu_custom_call.1} parent=1 // pred_fallthru
      _
    %v23 = vld [vmem:[#allocation2] sm:$0xff]
    %v24 = vld [vmem:[#allocation2 + $0x8] sm:$0xff]
    %25 = vadd.xlane.f32.xlu0 %v23
    %v26 = vpop.xlane.xlu0 %25
    %27 = vadd.xlane.f32.xlu0 %v24
    %v28 = vpop.xlane.xlu0 %27
    %v29 = vrcp.pop 128.0
    %v30 = vmul.f32 %v26, %v29
    %v31 = vmul.f32 %v28, %v29
    %v32 = vsub.f32 %v23, %v30
    %v33 = vsub.f32 %v24, %v31
    %v34 = vmul.f32 %v32, %v32
    %v35 = vmul.f32 %v33, %v33
    %36 = vadd.xlane.f32.xlu0 %v34
    %v37 = vpop.xlane.xlu0 %36
    %38 = vadd.xlane.f32.xlu0 %v35
    %v39 = vpop.xlane.xlu0 %38
    %v40 = vrsqrt.pop %v37
    %v41 = vrsqrt.pop %v39
    %v42 = vmul.f32 %v32, %v40
    %v43 = vmul.f32 %v33, %v41
    %44 = vst [vmem:[#allocation5] sm:$0xff] %v42
    %45 = vst [vmem:[#allocation5 + $0x8] sm:$0xff] %v43
    // Predicated region
    $region10: #{tpu_custom_call.1} parent=1 // pred_check
      _
    $region11: #{tpu_custom_call.1} parent=1 // pred_check_branch
      %47 = sbr.rel (0) target = $region13
    $region12: #{tpu_custom_call.1} parent=1 // pred_region
      %s49 = ssub.s32 256, 256
      %50 = vsyncadd [#allocation4], %s49
      %s51 = sshll.u32 [#allocation5], 4
      %s52 = int_to_ptr.vmem [resolvable:$true] %s51
      %57 = dma.vmem_to_hbm [thread:$0]  %s52, 256, %s1, [#allocation4], 128, 128, 8
    $region13: #{tpu_custom_call.1} parent=1 // pred_fallthru
      _
    // Predicated region
    $region14: #{tpu_custom_call.1} parent=1 // pred_check
      _
    $region15: #{tpu_custom_call.1} parent=1 // pred_check_branch
      %59 = sbr.rel (0) target = $region17
    $region16: #{tpu_custom_call.1} parent=1 // pred_region
      %60 = dma.done [#allocation4], 256
    $region17: #{tpu_custom_call.1} parent=1 // pred_fallthru
      _
    %61 = vsyncpa [#allocation3], 1
    %62 = vsyncpa [#allocation4], 1

</llo_original>
